<compile_context>
chip_gen: v5e
topology: v5e:2x2
jax: 0.10.0
libtpu: 0.0.40
codegen_flags: <defaults>
</compile_context>

<pallas_src>
import functools

import jax
import jax.numpy as jnp
from jax.experimental import pallas as pl
from jax.experimental.pallas import tpu as pltpu


# ----------------------------- helpers ---------------------------------------

def _round_up(x: int, m: int) -> int:
    return ((x + m - 1) // m) * m


def _pad_lanes(d: int) -> int:
    return _round_up(d, 128)


# ----------------------------- Pallas kernel ---------------------------------

def _fused_ae_kernel(x_ref, w_ref, b_ref, recon_ref, z_ref, *,
                     num_layers, relu_flags, z_layer, in_dim, latent_dim):
    """Fused MLP autoencoder forward.

    x_ref:  (TM, in_dim)            f32   (unpadded lanes)
    w_ref:  (L, d_pad, d_pad)       bf16  (zero-padded, resident)
    b_ref:  (L, 1, d_pad)           f32   (zero-padded, resident)
    recon_ref: (TM, in_dim)         f32
    z_ref:     (TM, latent_dim)     f32

    The running activation `h` never leaves VMEM/vregs.  Zero padding is
    exact: padded weight rows/cols and bias entries are 0, so padded
    activation lanes stay 0 through bias+ReLU and contribute nothing.
    """
    mm_dtype = w_ref.dtype
    h = x_ref[...]                                      # (TM, in_dim) f32
    for i in range(num_layers):
        if i == 0:
            # x is unpadded: use only the real K rows of the packed weight.
            w = w_ref[0, :in_dim, :]                    # (in_dim, d_pad)
        else:
            w = w_ref[i]                                # (d_pad, d_pad)
        h = jnp.dot(h.astype(mm_dtype), w,
                    preferred_element_type=jnp.float32) + b_ref[i]
        if relu_flags[i]:
            h = jnp.maximum(h, 0.0)
        if i == z_layer:
            z_ref[...] = h[:, :latent_dim].astype(z_ref.dtype)
    recon_ref[...] = h[:, :in_dim].astype(recon_ref.dtype)


# ----------------------------- Param packing (one-time) ----------------------

def pack_autoencoder_params(params, matmul_dtype=jnp.bfloat16):
    """Pad + pack all layers ONCE (hoisted out of the forward path)."""
    layers = list(params["encoder"]) + list(params["decoder"])
    num_layers = len(layers)
    in_dim = layers[0][0].shape[0]
    latent_dim = params["encoder"][-1][0].shape[1]
    d_pad = max(_pad_lanes(d)
                for d in [in_dim] + [w.shape[1] for (w, _) in layers])

    w_packed = jnp.zeros((num_layers, d_pad, d_pad), matmul_dtype)
    b_packed = jnp.zeros((num_layers, 1, d_pad), jnp.float32)
    for i, (w, b) in enumerate(layers):
        K, N = w.shape
        w_packed = w_packed.at[i, :K, :N].set(w.astype(matmul_dtype))
        b_packed = b_packed.at[i, 0, :N].set(b.astype(jnp.float32))

    meta = dict(num_layers=num_layers, n_enc=len(params["encoder"]),
                in_dim=in_dim, latent_dim=latent_dim, d_pad=d_pad)
    return w_packed, b_packed, meta


# ----------------------------- Fused forward ---------------------------------

def autoencoder_forward(w_packed, b_packed, x, *, meta, tm_cap=1024):
    """Returns (recon_x, z), matching Autoencoder.forward (single pallas_call)."""
    num_layers = meta["num_layers"]
    n_enc = meta["n_enc"]
    in_dim = meta["in_dim"]
    latent_dim = meta["latent_dim"]
    d_pad = meta["d_pad"]

    z_layer = n_enc - 1                                   # latent (no ReLU)
    relu_flags = tuple(
        (i != z_layer) and (i != num_layers - 1) for i in range(num_layers)
    )

    M = x.shape[0]
    # Batch tile: big (amortize per-step overhead), sublane-aligned; for
    # non-trivial batches guarantee >= 2 grid steps so "parallel" can shard
    # across both TensorCores on v7x.
    TM = min(tm_cap, _round_up(M, 8))
    if M >= 16 and pl.cdiv(M, TM) < 2:
        TM = _round_up(pl.cdiv(M, 2), 8)
    grid = (pl.cdiv(M, TM),)

    kernel = functools.partial(
        _fused_ae_kernel,
        num_layers=num_layers,
        relu_flags=relu_flags,
        z_layer=z_layer,
        in_dim=in_dim,
        latent_dim=latent_dim,
    )

    recon, z = pl.pallas_call(
        kernel,
        out_shape=(
            jax.ShapeDtypeStruct((M, in_dim), jnp.float32),      # recon_x
            jax.ShapeDtypeStruct((M, latent_dim), jnp.float32),  # z
        ),
        grid_spec=pltpu.PrefetchScalarGridSpec(
            num_scalar_prefetch=0,
            grid=grid,
            in_specs=[
                pl.BlockSpec((TM, in_dim), lambda i: (i, 0)),            # x
                pl.BlockSpec((num_layers, d_pad, d_pad),
                             lambda i: (0, 0, 0)),                       # W (resident)
                pl.BlockSpec((num_layers, 1, d_pad),
                             lambda i: (0, 0, 0)),                       # B (resident)
            ],
            out_specs=[
                pl.BlockSpec((TM, in_dim), lambda i: (i, 0)),
                pl.BlockSpec((TM, latent_dim), lambda i: (i, 0)),
            ],
        ),
        compiler_params=pltpu.CompilerParams(
            dimension_semantics=("parallel",),          # megacore on v7x
            vmem_limit_bytes=32 * 1024 * 1024,          # headroom for big TM on v5e
        ),
    )(x, w_packed, b_packed)

    return recon, z


# ----------------------------- Parameter setup -------------------------------

def _init_linear(key, in_dim, out_dim):
    """Deterministic init mimicking nn.Linear default (uniform +/- 1/sqrt(in))."""
    kw, kb = jax.random.split(key)
    bound = 1.0 / jnp.sqrt(jnp.asarray(in_dim, jnp.float32))
    # Stored as (in_dim, out_dim) == PyTorch weight.T
    w = jax.random.uniform(kw, (in_dim, out_dim), jnp.float32, -bound, bound)
    b = jax.random.uniform(kb, (out_dim,), jnp.float32, -bound, bound)
    return w, b


def make_autoencoder_params(key, input_dim, latent_dim, hidden_dims):
    params = {"encoder": [], "decoder": []}
    dims = [input_dim] + list(hidden_dims) + [latent_dim]
    for i in range(len(dims) - 1):
        key, sub = jax.random.split(key)
        params["encoder"].append(_init_linear(sub, dims[i], dims[i + 1]))
    dims = [latent_dim] + list(reversed(hidden_dims)) + [input_dim]
    for i in range(len(dims) - 1):
        key, sub = jax.random.split(key)
        params["decoder"].append(_init_linear(sub, dims[i], dims[i + 1]))
    return params


# ----------------------------- Reference -------------------------------------

def autoencoder_forward_ref(params, x, matmul_dtype=jnp.bfloat16):
    """Pure-JAX reference with the same numerics (bf16 matmul operands,
    f32 accumulate / bias / ReLU)."""
    layers = list(params["encoder"]) + list(params["decoder"])
    n_enc = len(params["encoder"])
    h = x.astype(jnp.float32)
    z = None
    for i, (w, b) in enumerate(layers):
        h = jnp.dot(h.astype(matmul_dtype), w.astype(matmul_dtype),
                    preferred_element_type=jnp.float32) + b
        if i != n_enc - 1 and i != len(layers) - 1:
            h = jnp.maximum(h, 0.0)
        if i == n_enc - 1:
            z = h
    return h, z


# ----------------------------------- Main -------------------------------------

if __name__ == "__main__":
    batch = 8
    input_dim = 32
    latent_dim = 8
    hidden_dims = [64, 16]
    dropout_rate = 0.0  # TODO(synk): inference-mode dropout is identity; training-mode dropout not implemented.

    key = jax.random.PRNGKey(0)
    key_params, key_x = jax.random.split(key)
    params = make_autoencoder_params(key_params, input_dim, latent_dim, hidden_dims)
    x = jax.random.normal(key_x, (batch, input_dim), dtype=jnp.float32)

    # One-time prepare step (padding/packing hoisted out of the forward path).
    w_packed, b_packed, meta = pack_autoencoder_params(params)

    fwd = jax.jit(functools.partial(autoencoder_forward, meta=meta))
    recon_x, z = fwd(w_packed, b_packed, x)
    recon_x, z = jax.block_until_ready((recon_x, z))

    # Sanity check against pure-JAX reference (same bf16-matmul numerics).
    recon_ref, z_ref = autoencoder_forward_ref(params, x)
    assert recon_x.shape == (batch, input_dim)
    assert z.shape == (batch, latent_dim)
    assert jnp.allclose(z, z_ref, atol=2e-3, rtol=2e-3), \
        float(jnp.max(jnp.abs(z - z_ref)))
    assert jnp.allclose(recon_x, recon_ref, atol=2e-3, rtol=2e-3), \
        float(jnp.max(jnp.abs(recon_x - recon_ref)))

    print("KERNEL_OK")
</pallas_src>

<mosaic_0001>
module attributes {stable_mosaic.version = 11 : i64} {
  func.func @_fused_ae_kernel(%arg0: i32, %arg1: memref<8x32xf32, #tpu.memory_space<vmem>>, %arg2: memref<6x128x128xbf16, #tpu.memory_space<vmem>>, %arg3: memref<6x1x128xf32, #tpu.memory_space<vmem>>, %arg4: memref<8x32xf32, #tpu.memory_space<vmem>>, %arg5: memref<8x8xf32, #tpu.memory_space<vmem>>) attributes {dimension_semantics = [#tpu.dimension_semantics<parallel>], iteration_bounds = array<i64: 1>, scalar_prefetch = 0 : i64, scratch_operands = 0 : i64, tpu.core_type = #tpu.core_type<tc>, window_params = [{transform_indices = @transform_0, window_bounds = array<i64: 8, 32>}, {pipeline_mode = #tpu.pipeline_mode<synchronous>, transform_indices = @transform_1, window_bounds = array<i64: 6, 128, 128>}, {pipeline_mode = #tpu.pipeline_mode<synchronous>, transform_indices = @transform_2, window_bounds = array<i64: 6, 1, 128>}, {transform_indices = @transform_3, window_bounds = array<i64: 8, 32>}, {transform_indices = @transform_4, window_bounds = array<i64: 8, 8>}]} {
    %c0 = arith.constant 0 : index
    %c0_0 = arith.constant 0 : index
    %0 = vector.load %arg1[%c0, %c0_0] : memref<8x32xf32, #tpu.memory_space<vmem>>, vector<8x32xf32>
    %c0_1 = arith.constant 0 : index
    %c0_2 = arith.constant 0 : index
    %c0_3 = arith.constant 0 : index
    %1 = vector.load %arg2[%c0_1, %c0_2, %c0_3] : memref<6x128x128xbf16, #tpu.memory_space<vmem>>, vector<1x32x128xbf16>
    %2 = vector.shape_cast %1 : vector<1x32x128xbf16> to vector<32x128xbf16>
    %3 = arith.truncf %0 : vector<8x32xf32> to vector<8x32xbf16>
    %cst = arith.constant dense<0.000000e+00> : vector<8x128xf32>
    %4 = tpu.matmul %3, %2, %cst {dimension_numbers = #tpu.dot_dimension_numbers<[1], [0], [0], [1], [0, 0, 1, 1], [], []>} : vector<8x32xbf16>, vector<32x128xbf16>, vector<8x128xf32> -> vector<8x128xf32>
    %c0_4 = arith.constant 0 : index
    %c0_5 = arith.constant 0 : index
    %c0_6 = arith.constant 0 : index
    %5 = vector.load %arg3[%c0_4, %c0_5, %c0_6] : memref<6x1x128xf32, #tpu.memory_space<vmem>>, vector<1x1x128xf32>
    %6 = vector.shape_cast %5 : vector<1x1x128xf32> to vector<1x128xf32>
    %7 = vector.broadcast %6 : vector<1x128xf32> to vector<8x128xf32>
    %8 = arith.addf %4, %7 : vector<8x128xf32>
    %cst_7 = arith.constant 0.000000e+00 : f32
    %9 = vector.broadcast %cst_7 : f32 to vector<8x128xf32>
    %10 = arith.maximumf %8, %9 : vector<8x128xf32>
    %c1 = arith.constant 1 : index
    %c0_8 = arith.constant 0 : index
    %c0_9 = arith.constant 0 : index
    %11 = vector.load %arg2[%c1, %c0_8, %c0_9] : memref<6x128x128xbf16, #tpu.memory_space<vmem>>, vector<1x128x128xbf16>
    %12 = vector.shape_cast %11 : vector<1x128x128xbf16> to vector<128x128xbf16>
    %13 = arith.truncf %10 : vector<8x128xf32> to vector<8x128xbf16>
    %cst_10 = arith.constant dense<0.000000e+00> : vector<8x128xf32>
    %14 = tpu.matmul %13, %12, %cst_10 {dimension_numbers = #tpu.dot_dimension_numbers<[1], [0], [0], [1], [0, 0, 1, 1], [], []>} : vector<8x128xbf16>, vector<128x128xbf16>, vector<8x128xf32> -> vector<8x128xf32>
    %c1_11 = arith.constant 1 : index
    %c0_12 = arith.constant 0 : index
    %c0_13 = arith.constant 0 : index
    %15 = vector.load %arg3[%c1_11, %c0_12, %c0_13] : memref<6x1x128xf32, #tpu.memory_space<vmem>>, vector<1x1x128xf32>
    %16 = vector.shape_cast %15 : vector<1x1x128xf32> to vector<1x128xf32>
    %17 = vector.broadcast %16 : vector<1x128xf32> to vector<8x128xf32>
    %18 = arith.addf %14, %17 : vector<8x128xf32>
    %cst_14 = arith.constant 0.000000e+00 : f32
    %19 = vector.broadcast %cst_14 : f32 to vector<8x128xf32>
    %20 = arith.maximumf %18, %19 : vector<8x128xf32>
    %c2 = arith.constant 2 : index
    %c0_15 = arith.constant 0 : index
    %c0_16 = arith.constant 0 : index
    %21 = vector.load %arg2[%c2, %c0_15, %c0_16] : memref<6x128x128xbf16, #tpu.memory_space<vmem>>, vector<1x128x128xbf16>
    %22 = vector.shape_cast %21 : vector<1x128x128xbf16> to vector<128x128xbf16>
    %23 = arith.truncf %20 : vector<8x128xf32> to vector<8x128xbf16>
    %cst_17 = arith.constant dense<0.000000e+00> : vector<8x128xf32>
    %24 = tpu.matmul %23, %22, %cst_17 {dimension_numbers = #tpu.dot_dimension_numbers<[1], [0], [0], [1], [0, 0, 1, 1], [], []>} : vector<8x128xbf16>, vector<128x128xbf16>, vector<8x128xf32> -> vector<8x128xf32>
    %c2_18 = arith.constant 2 : index
    %c0_19 = arith.constant 0 : index
    %c0_20 = arith.constant 0 : index
    %25 = vector.load %arg3[%c2_18, %c0_19, %c0_20] : memref<6x1x128xf32, #tpu.memory_space<vmem>>, vector<1x1x128xf32>
    %26 = vector.shape_cast %25 : vector<1x1x128xf32> to vector<1x128xf32>
    %27 = vector.broadcast %26 : vector<1x128xf32> to vector<8x128xf32>
    %28 = arith.addf %24, %27 : vector<8x128xf32>
    %29 = vector.extract_strided_slice %28 {offsets = [0, 0], sizes = [8, 8], strides = [1, 1]} : vector<8x128xf32> to vector<8x8xf32>
    %c0_21 = arith.constant 0 : index
    %c0_22 = arith.constant 0 : index
    %30 = vector.load %arg5[%c0_21, %c0_22] : memref<8x8xf32, #tpu.memory_space<vmem>>, vector<8x8xf32>
    tpu.vector_store %arg5[%c0_21, %c0_22], %29 {strides = array<i32>} : memref<8x8xf32, #tpu.memory_space<vmem>>, vector<8x8xf32>,
    %c3 = arith.constant 3 : index
    %c0_23 = arith.constant 0 : index
    %c0_24 = arith.constant 0 : index
    %31 = vector.load %arg2[%c3, %c0_23, %c0_24] : memref<6x128x128xbf16, #tpu.memory_space<vmem>>, vector<1x128x128xbf16>
    %32 = vector.shape_cast %31 : vector<1x128x128xbf16> to vector<128x128xbf16>
    %33 = arith.truncf %28 : vector<8x128xf32> to vector<8x128xbf16>
    %cst_25 = arith.constant dense<0.000000e+00> : vector<8x128xf32>
    %34 = tpu.matmul %33, %32, %cst_25 {dimension_numbers = #tpu.dot_dimension_numbers<[1], [0], [0], [1], [0, 0, 1, 1], [], []>} : vector<8x128xbf16>, vector<128x128xbf16>, vector<8x128xf32> -> vector<8x128xf32>
    %c3_26 = arith.constant 3 : index
    %c0_27 = arith.constant 0 : index
    %c0_28 = arith.constant 0 : index
    %35 = vector.load %arg3[%c3_26, %c0_27, %c0_28] : memref<6x1x128xf32, #tpu.memory_space<vmem>>, vector<1x1x128xf32>
    %36 = vector.shape_cast %35 : vector<1x1x128xf32> to vector<1x128xf32>
    %37 = vector.broadcast %36 : vector<1x128xf32> to vector<8x128xf32>
    %38 = arith.addf %34, %37 : vector<8x128xf32>
    %cst_29 = arith.constant 0.000000e+00 : f32
    %39 = vector.broadcast %cst_29 : f32 to vector<8x128xf32>
    %40 = arith.maximumf %38, %39 : vector<8x128xf32>
    %c4 = arith.constant 4 : index
    %c0_30 = arith.constant 0 : index
    %c0_31 = arith.constant 0 : index
    %41 = vector.load %arg2[%c4, %c0_30, %c0_31] : memref<6x128x128xbf16, #tpu.memory_space<vmem>>, vector<1x128x128xbf16>
    %42 = vector.shape_cast %41 : vector<1x128x128xbf16> to vector<128x128xbf16>
    %43 = arith.truncf %40 : vector<8x128xf32> to vector<8x128xbf16>
    %cst_32 = arith.constant dense<0.000000e+00> : vector<8x128xf32>
    %44 = tpu.matmul %43, %42, %cst_32 {dimension_numbers = #tpu.dot_dimension_numbers<[1], [0], [0], [1], [0, 0, 1, 1], [], []>} : vector<8x128xbf16>, vector<128x128xbf16>, vector<8x128xf32> -> vector<8x128xf32>
    %c4_33 = arith.constant 4 : index
    %c0_34 = arith.constant 0 : index
    %c0_35 = arith.constant 0 : index
    %45 = vector.load %arg3[%c4_33, %c0_34, %c0_35] : memref<6x1x128xf32, #tpu.memory_space<vmem>>, vector<1x1x128xf32>
    %46 = vector.shape_cast %45 : vector<1x1x128xf32> to vector<1x128xf32>
    %47 = vector.broadcast %46 : vector<1x128xf32> to vector<8x128xf32>
    %48 = arith.addf %44, %47 : vector<8x128xf32>
    %cst_36 = arith.constant 0.000000e+00 : f32
    %49 = vector.broadcast %cst_36 : f32 to vector<8x128xf32>
    %50 = arith.maximumf %48, %49 : vector<8x128xf32>
    %c5 = arith.constant 5 : index
    %c0_37 = arith.constant 0 : index
    %c0_38 = arith.constant 0 : index
    %51 = vector.load %arg2[%c5, %c0_37, %c0_38] : memref<6x128x128xbf16, #tpu.memory_space<vmem>>, vector<1x128x128xbf16>
    %52 = vector.shape_cast %51 : vector<1x128x128xbf16> to vector<128x128xbf16>
    %53 = arith.truncf %50 : vector<8x128xf32> to vector<8x128xbf16>
    %cst_39 = arith.constant dense<0.000000e+00> : vector<8x128xf32>
    %54 = tpu.matmul %53, %52, %cst_39 {dimension_numbers = #tpu.dot_dimension_numbers<[1], [0], [0], [1], [0, 0, 1, 1], [], []>} : vector<8x128xbf16>, vector<128x128xbf16>, vector<8x128xf32> -> vector<8x128xf32>
    %c5_40 = arith.constant 5 : index
    %c0_41 = arith.constant 0 : index
    %c0_42 = arith.constant 0 : index
    %55 = vector.load %arg3[%c5_40, %c0_41, %c0_42] : memref<6x1x128xf32, #tpu.memory_space<vmem>>, vector<1x1x128xf32>
    %56 = vector.shape_cast %55 : vector<1x1x128xf32> to vector<1x128xf32>
    %57 = vector.broadcast %56 : vector<1x128xf32> to vector<8x128xf32>
    %58 = arith.addf %54, %57 : vector<8x128xf32>
    %59 = vector.extract_strided_slice %58 {offsets = [0, 0], sizes = [8, 32], strides = [1, 1]} : vector<8x128xf32> to vector<8x32xf32>
    %c0_43 = arith.constant 0 : index
    %c0_44 = arith.constant 0 : index
    %60 = vector.load %arg4[%c0_43, %c0_44] : memref<8x32xf32, #tpu.memory_space<vmem>>, vector<8x32xf32>
    tpu.vector_store %arg4[%c0_43, %c0_44], %59 {strides = array<i32>} : memref<8x32xf32, #tpu.memory_space<vmem>>, vector<8x32xf32>,
    return
  }
  func.func @transform_0(%arg0: i32) -> (i32, i32) {
    %c0_i32 = arith.constant 0 : i32
    %c0_i32_0 = arith.constant 0 : i32
    return %arg0, %c0_i32 : i32, i32
  }
  func.func @transform_1(%arg0: i32) -> (i32, i32, i32) {
    %c0_i32 = arith.constant 0 : i32
    %c0_i32_0 = arith.constant 0 : i32
    %c0_i32_1 = arith.constant 0 : i32
    %c0_i32_2 = arith.constant 0 : i32
    return %c0_i32, %c0_i32_0, %c0_i32_1 : i32, i32, i32
  }
  func.func @transform_2(%arg0: i32) -> (i32, i32, i32) {
    %c0_i32 = arith.constant 0 : i32
    %c0_i32_0 = arith.constant 0 : i32
    %c0_i32_1 = arith.constant 0 : i32
    %c0_i32_2 = arith.constant 0 : i32
    return %c0_i32, %c0_i32_0, %c0_i32_1 : i32, i32, i32
  }
  func.func @transform_3(%arg0: i32) -> (i32, i32) {
    %c0_i32 = arith.constant 0 : i32
    %c0_i32_0 = arith.constant 0 : i32
    return %arg0, %c0_i32 : i32, i32
  }
  func.func @transform_4(%arg0: i32) -> (i32, i32) {
    %c0_i32 = arith.constant 0 : i32
    %c0_i32_0 = arith.constant 0 : i32
    return %arg0, %c0_i32 : i32, i32
  }
}

</mosaic_0001>

<llo_original>
// kernel: autoencoder_forward.1
$region0: #{autoencoder_forward.1}
  #allocation0 [shape = 'u32[]', space=smem, size = 0x4, offset = 0x4, fixed_abs, tag = 'smem constant byte address 0x4 - core index']
  #allocation1 [shape = 'u32[72,128]{1,0:T(1,128)}', space=vmem, size = 0x9000, scoped, tag = 'internal scratch']
  %s0 = inlined_call_operand.hbm [shape: f32[8,32], index: 0, kind: input, shape index: {}]
  %s1 = inlined_call_operand.hbm [shape: bf16[6,128,128], index: 1, kind: input, shape index: {}]
  %s2 = inlined_call_operand.hbm [shape: f32[6,1,128], index: 2, kind: input, shape index: {}]
  %s3 = inlined_call_operand.hbm [shape: f32[8,32], index: 3, kind: output, shape index: {0}]
  %s4 = inlined_call_operand.hbm [shape: f32[8,8], index: 4, kind: output, shape index: {1}]
  %5 = xla_tuple %s3, %s4
  %s6 = sld [smem:[#allocation0]]
  $region42: #{autoencoder_forward.1} parent=0
    _
  %s8 = ssub.s32 1, %s6
  %s9 = scalar_select 0, %s8, %s6
  $region1: #{autoencoder_forward.1} parent=0
    #allocation2 [shape = 'u8[4096]{0}', space=vmem, size = 0x1000, scoped, tag = 'input window, operand 0, single buffered']
    #allocation3 [shape = 's32[1]{0}', space=sflag, size = 0x4, scoped, tag = 'scoped memory for autoencoder_forward.1']
    #allocation4 [shape = 's32[1]{0}', space=sflag, size = 0x4, scoped, tag = 'scoped memory for autoencoder_forward.1']
    #allocation5 [shape = 'u8[196608]{0}', space=vmem, size = 0x30000, scoped, tag = 'input window, operand 1, single buffered']
    #allocation6 [shape = 's32[1]{0}', space=sflag, size = 0x4, scoped, tag = 'scoped memory for autoencoder_forward.1']
    #allocation7 [shape = 'u8[3072]{0}', space=vmem, size = 0xc00, scoped, tag = 'input window, operand 2, single buffered']
    #allocation8 [shape = 'u8[4096]{0}', space=vmem, size = 0x1000, scoped, tag = 'output window, operand 0, single buffered']
    #allocation9 [shape = 'u8[4096]{0}', space=vmem, size = 0x1000, scoped, tag = 'output window, operand 1, single buffered']
    #allocation10 [shape = 's32[1]{0}', space=sflag, size = 0x4, scoped, tag = 'scoped memory for autoencoder_forward.1']
    %10 = vsyncpa [#allocation3], 0
    %11 = vsyncpa [#allocation6], 0
    %12 = vsyncpa [#allocation4], 0
    %13 = vsyncpa [#allocation10], 0
    // Predicated region
    $region2: #{autoencoder_forward.1} parent=1 // pred_check
      _
    $region3: #{autoencoder_forward.1} parent=1 // pred_check_branch
      %15 = sbr.rel (0) target = $region5
    $region4: #{autoencoder_forward.1} parent=1 // pred_region
      %17 = vsyncadd [#allocation3], 0
      %s19 = sshll.u32 %s0, 4
      %s20 = int_to_ptr.hbm [resolvable:$true] %s19
      %s21 = sshll.u32 [#allocation2], 4
      %s22 = int_to_ptr.vmem [resolvable:$true] %s21
      %24 = dma.hbm_to_vmem [thread:$0]  %s20, 128, %s22, [#allocation3]
    $region5: #{autoencoder_forward.1} parent=1 // pred_fallthru
      _
    // Predicated region
    $region6: #{autoencoder_forward.1} parent=1 // pred_check
      _
    $region7: #{autoencoder_forward.1} parent=1 // pred_check_branch
      %26 = sbr.rel (0) target = $region9
    $region8: #{autoencoder_forward.1} parent=1 // pred_region
      %28 = vsyncadd [#allocation6], 0
      %s29 = sshll.u32 %s1, 4
      %s30 = int_to_ptr.hbm [resolvable:$true] %s29
      %s31 = sshll.u32 [#allocation5], 4
      %s32 = int_to_ptr.vmem [resolvable:$true] %s31
      %37 = dma.hbm_to_vmem [thread:$0]  %s30, 6144, %s32, [#allocation6], 64, 64, 4
    $region9: #{autoencoder_forward.1} parent=1 // pred_fallthru
      _
    // Predicated region
    $region10: #{autoencoder_forward.1} parent=1 // pred_check
      _
    $region11: #{autoencoder_forward.1} parent=1 // pred_check_branch
      %39 = sbr.rel (0) target = $region13
    $region12: #{autoencoder_forward.1} parent=1 // pred_region
      %41 = vsyncadd [#allocation6], 0
      %s42 = sshll.u32 %s2, 4
      %s43 = int_to_ptr.hbm [resolvable:$true] %s42
      %s44 = sshll.u32 [#allocation7], 4
      %s45 = int_to_ptr.vmem [resolvable:$true] %s44
      %50 = dma.hbm_to_vmem [thread:$0]  %s43, 96, %s45, [#allocation6], 16, 16, 1
    $region13: #{autoencoder_forward.1} parent=1 // pred_fallthru
      _
    // Predicated region
    $region14: #{autoencoder_forward.1} parent=1 // pred_check
      _
    $region15: #{autoencoder_forward.1} parent=1 // pred_check_branch
      %52 = sbr.rel (0) target = $region17
    $region16: #{autoencoder_forward.1} parent=1 // pred_region
      %54 = dma.done [#allocation3], 128
    $region17: #{autoencoder_forward.1} parent=1 // pred_fallthru
      _
    // Predicated region
    $region18: #{autoencoder_forward.1} parent=1 // pred_check
      _
    $region19: #{autoencoder_forward.1} parent=1 // pred_check_branch
      %56 = sbr.rel (0) target = $region21
    $region20: #{autoencoder_forward.1} parent=1 // pred_region
      %58 = dma.done [#allocation6], 6144
    $region21: #{autoencoder_forward.1} parent=1 // pred_fallthru
      _
    // Predicated region
    $region22: #{autoencoder_forward.1} parent=1 // pred_check
      _
    $region23: #{autoencoder_forward.1} parent=1 // pred_check_branch
      %60 = sbr.rel (0) target = $region25
    $region24: #{autoencoder_forward.1} parent=1 // pred_region
      %62 = dma.done [#allocation6], 96
    $region25: #{autoencoder_forward.1} parent=1 // pred_fallthru
      _
    %v64 = vld [vmem:[#allocation2] sm:$0xff]
    %v65 = vld [vmem:[#allocation5] sm:$0xf]
    %v66 = vld [vmem:[#allocation5 + $0x4] sm:$0xf]
    %v67 = vld [vmem:[#allocation5 + $0x8] sm:$0xf]
    %v68 = vld [vmem:[#allocation5 + $0xc] sm:$0xf]
    %v69 = vpack.c.bf16 %v64, %v64
    %v70 = vld [vmem:[#allocation7] sm:$0x1]
    %v72 = vperm.slane %v70, 0
    %v78 = vunpack.c.l.b16 %v65
    %v79 = vunpack.c.l.b16 %v66
    %v80 = vunpack.c.l.b16 %v67
    %v81 = vunpack.c.l.b16 %v68
    %v82 = vpack.c.b16 %v79, %v78
    %v83 = vpack.c.b16 %v81, %v80
    %vm86 = vcmask 261120
    %v88 = vsel %vm86, %v69, 0
    %90 = vmatpush.bf16.msra.mxu0 0
    %91 = vmatpush.bf16.msra.mxu0 0
    %92 = vmatpush.bf16.msra.mxu0 0
    %93 = vmatpush.bf16.msra.mxu0 0
    %94 = vmatpush.bf16.msra.mxu0 0
    %95 = vmatpush.bf16.msra.mxu0 0
    %96 = vmatpush.bf16.msra.mxu0 %v83
    %97 = vmatpush.bf16.msra.mxu0 %v82
    %98 = vmatmul.bf16.gmra.mxu0 %v88
    %v99 = vpop.f32.mrf.mxu0
    %v100 = vadd.f32 %v72, %v99
    %v101 = vpop.f32.mrf.mxu0
    %102 = vdwg.mxu0
    %v103 = vmax.f32 %v100, 0.0
    %s104 = scalar_lea.vmem [#allocation5], 64
    %v105 = vld [vmem:[%s104] sm:$0xf]
    %v106 = vld [vmem:[%s104 + $0x4] sm:$0xf]
    %v107 = vld [vmem:[%s104 + $0x8] sm:$0xf]
    %v108 = vld [vmem:[%s104 + $0xc] sm:$0xf]
    %v109 = vld [vmem:[%s104 + $0x10] sm:$0xf]
    %v110 = vld [vmem:[%s104 + $0x14] sm:$0xf]
    %v111 = vld [vmem:[%s104 + $0x18] sm:$0xf]
    %v112 = vld [vmem:[%s104 + $0x1c] sm:$0xf]
    %v113 = vld [vmem:[%s104 + $0x20] sm:$0xf]
    %v114 = vld [vmem:[%s104 + $0x24] sm:$0xf]
    %v115 = vld [vmem:[%s104 + $0x28] sm:$0xf]
    %v116 = vld [vmem:[%s104 + $0x2c] sm:$0xf]
    %v117 = vld [vmem:[%s104 + $0x30] sm:$0xf]
    %v118 = vld [vmem:[%s104 + $0x34] sm:$0xf]
    %v119 = vld [vmem:[%s104 + $0x38] sm:$0xf]
    %v120 = vld [vmem:[%s104 + $0x3c] sm:$0xf]
    %v121 = vpack.c.bf16 %v103, %v103
    %s122 = scalar_lea.vmem [#allocation7], 1
    %v123 = vld [vmem:[%s122] sm:$0x1]
    %v125 = vperm.slane %v123, 0
    %v143 = vunpack.c.l.b16 %v105
    %v144 = vunpack.c.l.b16 %v106
    %v145 = vunpack.c.l.b16 %v107
    %v146 = vunpack.c.l.b16 %v108
    %v147 = vunpack.c.l.b16 %v109
    %v148 = vunpack.c.l.b16 %v110
    %v149 = vunpack.c.l.b16 %v111
    %v150 = vunpack.c.l.b16 %v112
    %v151 = vunpack.c.l.b16 %v113
    %v152 = vunpack.c.l.b16 %v114
    %v153 = vunpack.c.l.b16 %v115
    %v154 = vunpack.c.l.b16 %v116
    %v155 = vunpack.c.l.b16 %v117
    %v156 = vunpack.c.l.b16 %v118
    %v157 = vunpack.c.l.b16 %v119
    %v158 = vunpack.c.l.b16 %v120
    %v159 = vpack.c.b16 %v144, %v143
    %v160 = vpack.c.b16 %v146, %v145
    %v161 = vpack.c.b16 %v148, %v147
    %v162 = vpack.c.b16 %v150, %v149
    %v163 = vpack.c.b16 %v152, %v151
    %v164 = vpack.c.b16 %v154, %v153
    %v165 = vpack.c.b16 %v156, %v155
    %v166 = vpack.c.b16 %v158, %v157
    %175 = vmatpush.bf16.msra.mxu0 %v166
    %176 = vmatpush.bf16.msra.mxu0 %v165
    %177 = vmatpush.bf16.msra.mxu0 %v164
    %178 = vmatpush.bf16.msra.mxu0 %v163
    %179 = vmatpush.bf16.msra.mxu0 %v162
    %180 = vmatpush.bf16.msra.mxu0 %v161
    %181 = vmatpush.bf16.msra.mxu0 %v160
    %182 = vmatpush.bf16.msra.mxu0 %v159
    %183 = vmatmul.bf16.gmra.mxu0 %v121
    %v184 = vpop.f32.mrf.mxu0
    %v185 = vadd.f32 %v125, %v184
    %v186 = vpop.f32.mrf.mxu0
    %187 = vdwg.mxu0
    %v188 = vmax.f32 %v185, 0.0
    %s189 = scalar_lea.vmem [#allocation5], 128
    %v190 = vld [vmem:[%s189] sm:$0xf]
    %v191 = vld [vmem:[%s189 + $0x4] sm:$0xf]
    %v192 = vld [vmem:[%s189 + $0x8] sm:$0xf]
    %v193 = vld [vmem:[%s189 + $0xc] sm:$0xf]
    %v194 = vld [vmem:[%s189 + $0x10] sm:$0xf]
    %v195 = vld [vmem:[%s189 + $0x14] sm:$0xf]
    %v196 = vld [vmem:[%s189 + $0x18] sm:$0xf]
    %v197 = vld [vmem:[%s189 + $0x1c] sm:$0xf]
    %v198 = vld [vmem:[%s189 + $0x20] sm:$0xf]
    %v199 = vld [vmem:[%s189 + $0x24] sm:$0xf]
    %v200 = vld [vmem:[%s189 + $0x28] sm:$0xf]
    %v201 = vld [vmem:[%s189 + $0x2c] sm:$0xf]
    %v202 = vld [vmem:[%s189 + $0x30] sm:$0xf]
    %v203 = vld [vmem:[%s189 + $0x34] sm:$0xf]
    %v204 = vld [vmem:[%s189 + $0x38] sm:$0xf]
    %v205 = vld [vmem:[%s189 + $0x3c] sm:$0xf]
    %v206 = vpack.c.bf16 %v188, %v188
    %s207 = scalar_lea.vmem [#allocation7], 2
    %v208 = vld [vmem:[%s207] sm:$0x1]
    %v210 = vperm.slane %v208, 0
    %v228 = vunpack.c.l.b16 %v190
    %v229 = vunpack.c.l.b16 %v191
    %v230 = vunpack.c.l.b16 %v192
    %v231 = vunpack.c.l.b16 %v193
    %v232 = vunpack.c.l.b16 %v194
    %v233 = vunpack.c.l.b16 %v195
    %v234 = vunpack.c.l.b16 %v196
    %v235 = vunpack.c.l.b16 %v197
    %v236 = vunpack.c.l.b16 %v198
    %v237 = vunpack.c.l.b16 %v199
    %v238 = vunpack.c.l.b16 %v200
    %v239 = vunpack.c.l.b16 %v201
    %v240 = vunpack.c.l.b16 %v202
    %v241 = vunpack.c.l.b16 %v203
    %v242 = vunpack.c.l.b16 %v204
    %v243 = vunpack.c.l.b16 %v205
    %v244 = vpack.c.b16 %v229, %v228
    %v245 = vpack.c.b16 %v231, %v230
    %v246 = vpack.c.b16 %v233, %v232
    %v247 = vpack.c.b16 %v235, %v234
    %v248 = vpack.c.b16 %v237, %v236
    %v249 = vpack.c.b16 %v239, %v238
    %v250 = vpack.c.b16 %v241, %v240
    %v251 = vpack.c.b16 %v243, %v242
    %260 = vmatpush.bf16.msra.mxu0 %v251
    %261 = vmatpush.bf16.msra.mxu0 %v250
    %262 = vmatpush.bf16.msra.mxu0 %v249
    %263 = vmatpush.bf16.msra.mxu0 %v248
    %264 = vmatpush.bf16.msra.mxu0 %v247
    %265 = vmatpush.bf16.msra.mxu0 %v246
    %266 = vmatpush.bf16.msra.mxu0 %v245
    %267 = vmatpush.bf16.msra.mxu0 %v244
    %268 = vmatmul.bf16.gmra.mxu0 %v206
    %v269 = vpop.f32.mrf.mxu0
    %v270 = vadd.f32 %v210, %v269
    %v271 = vpop.f32.mrf.mxu0
    %272 = vdwg.mxu0
    %vm273 = vcmask 64512
    %274 = vst.msk [vmem:[#allocation9] sm:$0xff] %vm273, %v270
    %s275 = scalar_lea.vmem [#allocation5], 192
    %v276 = vld [vmem:[%s275] sm:$0xf]
    %v277 = vld [vmem:[%s275 + $0x4] sm:$0xf]
    %v278 = vld [vmem:[%s275 + $0x8] sm:$0xf]
    %v279 = vld [vmem:[%s275 + $0xc] sm:$0xf]
    %v280 = vld [vmem:[%s275 + $0x10] sm:$0xf]
    %v281 = vld [vmem:[%s275 + $0x14] sm:$0xf]
    %v282 = vld [vmem:[%s275 + $0x18] sm:$0xf]
    %v283 = vld [vmem:[%s275 + $0x1c] sm:$0xf]
    %v284 = vld [vmem:[%s275 + $0x20] sm:$0xf]
    %v285 = vld [vmem:[%s275 + $0x24] sm:$0xf]
    %v286 = vld [vmem:[%s275 + $0x28] sm:$0xf]
    %v287 = vld [vmem:[%s275 + $0x2c] sm:$0xf]
    %v288 = vld [vmem:[%s275 + $0x30] sm:$0xf]
    %v289 = vld [vmem:[%s275 + $0x34] sm:$0xf]
    %v290 = vld [vmem:[%s275 + $0x38] sm:$0xf]
    %v291 = vld [vmem:[%s275 + $0x3c] sm:$0xf]
    %v292 = vpack.c.bf16 %v270, %v270
    %s293 = scalar_lea.vmem [#allocation7], 3
    %v294 = vld [vmem:[%s293] sm:$0x1]
    %v296 = vperm.slane %v294, 0
    %v314 = vunpack.c.l.b16 %v276
    %v315 = vunpack.c.l.b16 %v277
    %v316 = vunpack.c.l.b16 %v278
    %v317 = vunpack.c.l.b16 %v279
    %v318 = vunpack.c.l.b16 %v280
    %v319 = vunpack.c.l.b16 %v281
    %v320 = vunpack.c.l.b16 %v282
    %v321 = vunpack.c.l.b16 %v283
    %v322 = vunpack.c.l.b16 %v284
    %v323 = vunpack.c.l.b16 %v285
    %v324 = vunpack.c.l.b16 %v286
    %v325 = vunpack.c.l.b16 %v287
    %v326 = vunpack.c.l.b16 %v288
    %v327 = vunpack.c.l.b16 %v289
    %v328 = vunpack.c.l.b16 %v290
    %v329 = vunpack.c.l.b16 %v291
    %v330 = vpack.c.b16 %v315, %v314
    %v331 = vpack.c.b16 %v317, %v316
    %v332 = vpack.c.b16 %v319, %v318
    %v333 = vpack.c.b16 %v321, %v320
    %v334 = vpack.c.b16 %v323, %v322
    %v335 = vpack.c.b16 %v325, %v324
    %v336 = vpack.c.b16 %v327, %v326
    %v337 = vpack.c.b16 %v329, %v328
    %346 = vmatpush.bf16.msra.mxu0 %v337
    %347 = vmatpush.bf16.msra.mxu0 %v336
    %348 = vmatpush.bf16.msra.mxu0 %v335
    %349 = vmatpush.bf16.msra.mxu0 %v334
    %350 = vmatpush.bf16.msra.mxu0 %v333
    %351 = vmatpush.bf16.msra.mxu0 %v332
    %352 = vmatpush.bf16.msra.mxu0 %v331
    %353 = vmatpush.bf16.msra.mxu0 %v330
    %354 = vmatmul.bf16.gmra.mxu0 %v292
    %v355 = vpop.f32.mrf.mxu0
    %v356 = vadd.f32 %v296, %v355
    %v357 = vpop.f32.mrf.mxu0
    %358 = vdwg.mxu0
    %v359 = vmax.f32 %v356, 0.0
    %s360 = scalar_lea.vmem [#allocation5], 256
    %v361 = vld [vmem:[%s360] sm:$0xf]
    %v362 = vld [vmem:[%s360 + $0x4] sm:$0xf]
    %v363 = vld [vmem:[%s360 + $0x8] sm:$0xf]
    %v364 = vld [vmem:[%s360 + $0xc] sm:$0xf]
    %v365 = vld [vmem:[%s360 + $0x10] sm:$0xf]
    %v366 = vld [vmem:[%s360 + $0x14] sm:$0xf]
    %v367 = vld [vmem:[%s360 + $0x18] sm:$0xf]
    %v368 = vld [vmem:[%s360 + $0x1c] sm:$0xf]
    %v369 = vld [vmem:[%s360 + $0x20] sm:$0xf]
    %v370 = vld [vmem:[%s360 + $0x24] sm:$0xf]
    %v371 = vld [vmem:[%s360 + $0x28] sm:$0xf]
    %v372 = vld [vmem:[%s360 + $0x2c] sm:$0xf]
    %v373 = vld [vmem:[%s360 + $0x30] sm:$0xf]
    %v374 = vld [vmem:[%s360 + $0x34] sm:$0xf]
    %v375 = vld [vmem:[%s360 + $0x38] sm:$0xf]
    %v376 = vld [vmem:[%s360 + $0x3c] sm:$0xf]
    %v377 = vpack.c.bf16 %v359, %v359
    %s378 = scalar_lea.vmem [#allocation7], 4
    %v379 = vld [vmem:[%s378] sm:$0x1]
    %v381 = vperm.slane %v379, 0
    %v399 = vunpack.c.l.b16 %v361
    %v400 = vunpack.c.l.b16 %v362
    %v401 = vunpack.c.l.b16 %v363
    %v402 = vunpack.c.l.b16 %v364
    %v403 = vunpack.c.l.b16 %v365
    %v404 = vunpack.c.l.b16 %v366
    %v405 = vunpack.c.l.b16 %v367
    %v406 = vunpack.c.l.b16 %v368
    %v407 = vunpack.c.l.b16 %v369
    %v408 = vunpack.c.l.b16 %v370
    %v409 = vunpack.c.l.b16 %v371
    %v410 = vunpack.c.l.b16 %v372
    %v411 = vunpack.c.l.b16 %v373
    %v412 = vunpack.c.l.b16 %v374
    %v413 = vunpack.c.l.b16 %v375
    %v414 = vunpack.c.l.b16 %v376
    %v415 = vpack.c.b16 %v400, %v399
    %v416 = vpack.c.b16 %v402, %v401
    %v417 = vpack.c.b16 %v404, %v403
    %v418 = vpack.c.b16 %v406, %v405
    %v419 = vpack.c.b16 %v408, %v407
    %v420 = vpack.c.b16 %v410, %v409
    %v421 = vpack.c.b16 %v412, %v411
    %v422 = vpack.c.b16 %v414, %v413
    %431 = vmatpush.bf16.msra.mxu0 %v422
    %432 = vmatpush.bf16.msra.mxu0 %v421
    %433 = vmatpush.bf16.msra.mxu0 %v420
    %434 = vmatpush.bf16.msra.mxu0 %v419
    %435 = vmatpush.bf16.msra.mxu0 %v418
    %436 = vmatpush.bf16.msra.mxu0 %v417
    %437 = vmatpush.bf16.msra.mxu0 %v416
    %438 = vmatpush.bf16.msra.mxu0 %v415
    %439 = vmatmul.bf16.gmra.mxu0 %v377
    %v440 = vpop.f32.mrf.mxu0
    %v441 = vadd.f32 %v381, %v440
    %v442 = vpop.f32.mrf.mxu0
    %443 = vdwg.mxu0
    %v444 = vmax.f32 %v441, 0.0
    %s445 = scalar_lea.vmem [#allocation5], 320
    %v446 = vld [vmem:[%s445] sm:$0xf]
    %v447 = vld [vmem:[%s445 + $0x4] sm:$0xf]
    %v448 = vld [vmem:[%s445 + $0x8] sm:$0xf]
    %v449 = vld [vmem:[%s445 + $0xc] sm:$0xf]
    %v450 = vld [vmem:[%s445 + $0x10] sm:$0xf]
    %v451 = vld [vmem:[%s445 + $0x14] sm:$0xf]
    %v452 = vld [vmem:[%s445 + $0x18] sm:$0xf]
    %v453 = vld [vmem:[%s445 + $0x1c] sm:$0xf]
    %v454 = vld [vmem:[%s445 + $0x20] sm:$0xf]
    %v455 = vld [vmem:[%s445 + $0x24] sm:$0xf]
    %v456 = vld [vmem:[%s445 + $0x28] sm:$0xf]
    %v457 = vld [vmem:[%s445 + $0x2c] sm:$0xf]
    %v458 = vld [vmem:[%s445 + $0x30] sm:$0xf]
    %v459 = vld [vmem:[%s445 + $0x34] sm:$0xf]
    %v460 = vld [vmem:[%s445 + $0x38] sm:$0xf]
    %v461 = vld [vmem:[%s445 + $0x3c] sm:$0xf]
    %v462 = vpack.c.bf16 %v444, %v444
    %s463 = scalar_lea.vmem [#allocation7], 5
    %v464 = vld [vmem:[%s463] sm:$0x1]
    %v466 = vperm.slane %v464, 0
    %v484 = vunpack.c.l.b16 %v446
    %v485 = vunpack.c.l.b16 %v447
    %v486 = vunpack.c.l.b16 %v448
    %v487 = vunpack.c.l.b16 %v449
    %v488 = vunpack.c.l.b16 %v450
    %v489 = vunpack.c.l.b16 %v451
    %v490 = vunpack.c.l.b16 %v452
    %v491 = vunpack.c.l.b16 %v453
    %v492 = vunpack.c.l.b16 %v454
    %v493 = vunpack.c.l.b16 %v455
    %v494 = vunpack.c.l.b16 %v456
    %v495 = vunpack.c.l.b16 %v457
    %v496 = vunpack.c.l.b16 %v458
    %v497 = vunpack.c.l.b16 %v459
    %v498 = vunpack.c.l.b16 %v460
    %v499 = vunpack.c.l.b16 %v461
    %v500 = vpack.c.b16 %v485, %v484
    %v501 = vpack.c.b16 %v487, %v486
    %v502 = vpack.c.b16 %v489, %v488
    %v503 = vpack.c.b16 %v491, %v490
    %v504 = vpack.c.b16 %v493, %v492
    %v505 = vpack.c.b16 %v495, %v494
    %v506 = vpack.c.b16 %v497, %v496
    %v507 = vpack.c.b16 %v499, %v498
    %516 = vmatpush.bf16.msra.mxu0 %v507
    %517 = vmatpush.bf16.msra.mxu0 %v506
    %518 = vmatpush.bf16.msra.mxu0 %v505
    %519 = vmatpush.bf16.msra.mxu0 %v504
    %520 = vmatpush.bf16.msra.mxu0 %v503
    %521 = vmatpush.bf16.msra.mxu0 %v502
    %522 = vmatpush.bf16.msra.mxu0 %v501
    %523 = vmatpush.bf16.msra.mxu0 %v500
    %524 = vmatmul.bf16.gmra.mxu0 %v462
    %v525 = vpop.f32.mrf.mxu0
    %v526 = vadd.f32 %v466, %v525
    %v527 = vpop.f32.mrf.mxu0
    %528 = vdwg.mxu0
    %529 = vst.msk [vmem:[#allocation8] sm:$0xff] %vm86, %v526
    // Predicated region
    $region26: #{autoencoder_forward.1} parent=1 // pred_check
      _
    $region27: #{autoencoder_forward.1} parent=1 // pred_check_branch
      %531 = sbr.rel (0) target = $region29
    $region28: #{autoencoder_forward.1} parent=1 // pred_region
      %533 = vsyncadd [#allocation4], 0
      %s535 = sshll.u32 [#allocation8], 4
      %s536 = int_to_ptr.vmem [resolvable:$true] %s535
      %s537 = sshll.u32 %s3, 4
      %s538 = int_to_ptr.hbm [resolvable:$true] %s537
      %540 = dma.vmem_to_hbm [thread:$0]  %s536, 128, %s538, [#allocation4]
    $region29: #{autoencoder_forward.1} parent=1 // pred_fallthru
      _
    // Predicated region
    $region30: #{autoencoder_forward.1} parent=1 // pred_check
      _
    $region31: #{autoencoder_forward.1} parent=1 // pred_check_branch
      %542 = sbr.rel (0) target = $region33
    $region32: #{autoencoder_forward.1} parent=1 // pred_region
      %544 = vsyncadd [#allocation10], 0
      %s546 = sshll.u32 [#allocation9], 4
      %s547 = int_to_ptr.vmem [resolvable:$true] %s546
      %s548 = sshll.u32 %s4, 4
      %s549 = int_to_ptr.hbm [resolvable:$true] %s548
      %551 = dma.vmem_to_hbm [thread:$0]  %s547, 128, %s549, [#allocation10]
    $region33: #{autoencoder_forward.1} parent=1 // pred_fallthru
      _
    // Predicated region
    $region34: #{autoencoder_forward.1} parent=1 // pred_check
      _
    $region35: #{autoencoder_forward.1} parent=1 // pred_check_branch
      %553 = sbr.rel (0) target = $region37
    $region36: #{autoencoder_forward.1} parent=1 // pred_region
      %555 = dma.done [#allocation4], 128
    $region37: #{autoencoder_forward.1} parent=1 // pred_fallthru
      _
    // Predicated region
    $region38: #{autoencoder_forward.1} parent=1 // pred_check
      _
    $region39: #{autoencoder_forward.1} parent=1 // pred_check_branch
      %557 = sbr.rel (0) target = $region41
    $region40: #{autoencoder_forward.1} parent=1 // pred_region
      %559 = dma.done [#allocation10], 128
    $region41: #{autoencoder_forward.1} parent=1 // pred_fallthru
      _
    %560 = vsyncpa [#allocation3], 1
    %561 = vsyncpa [#allocation6], 1
    %562 = vsyncpa [#allocation4], 1
    %563 = vsyncpa [#allocation10], 1

</llo_original>
